<compile_context>
chip_gen: v7x
topology: tpu7x:2x2x1
jax: 0.10.0
libtpu: 0.0.40
codegen_flags: <defaults>
</compile_context>

<pallas_src>
import functools
import math

import jax
import jax.numpy as jnp
from jax.experimental import pallas as pl
from jax.experimental.pallas import tpu as pltpu

_QK_NORM_EPS_SQ = 1e-24           # (torch F.normalize eps = 1e-12)^2
_NEG_INF = -1e30


def _round_up(x, m):
    return ((x + m - 1) // m) * m


# --------------------------------------------------------------------------
# Per-generation VMEM limits (v5e/v6e: 128 MiB physical, v7x: 64 MiB)
# --------------------------------------------------------------------------
_VMEM_LIMITS = None


def _vmem_limits():
    """Returns (scoped vmem limit, pipeline-buffer budget) for this chip."""
    global _VMEM_LIMITS
    if _VMEM_LIMITS is None:
        cap = 64 * 1024 * 1024                      # conservative fallback (v7x physical)
        try:
            info = pltpu.get_tpu_info()
            cap = int(getattr(info, "vmem_capacity_bytes", cap) or cap)
        except Exception:
            pass
        limit = min((cap * 3) // 4, 96 * 1024 * 1024)   # ~96 MiB v5e/v6e, ~48 MiB v7x
        budget = (limit * 3) // 4
        _VMEM_LIMITS = (limit, budget)
    return _VMEM_LIMITS


def _vmem_limit():
    return _vmem_limits()[0]


# --------------------------------------------------------------------------
# Probe: can we single-buffer a grid-invariant operand with pl.Buffered(1)?
# (Falls back to default double-buffering on builds that reject it.)
# --------------------------------------------------------------------------
_WEIGHT_SINGLE_BUFFER = None


def _weight_single_buffer_supported():
    global _WEIGHT_SINGLE_BUFFER
    if _WEIGHT_SINGLE_BUFFER is not None:
        return _WEIGHT_SINGLE_BUFFER
    try:
        def _k(x_ref, w_ref, o_ref):
            o_ref[...] = jnp.dot(x_ref[...], w_ref[...],
                                 preferred_element_type=jnp.float32)

        x = jnp.ones((16, 128), jnp.float32)
        w = jnp.ones((128, 128), jnp.float32)
        out = pl.pallas_call(
            _k,
            out_shape=jax.ShapeDtypeStruct((16, 128), jnp.float32),
            grid_spec=pltpu.PrefetchScalarGridSpec(
                num_scalar_prefetch=0,
                grid=(2,),
                in_specs=[
                    pl.BlockSpec((8, 128), lambda i: (i, 0)),
                    pl.BlockSpec((128, 128), lambda i: (0, 0),
                                 pipeline_mode=pl.Buffered(1)),
                ],
                out_specs=pl.BlockSpec((8, 128), lambda i: (i, 0)),
            ),
        )(x, w)
        out = jax.block_until_ready(out)
        _WEIGHT_SINGLE_BUFFER = bool(jnp.allclose(out, 128.0))
    except Exception:
        _WEIGHT_SINGLE_BUFFER = False
    return _WEIGHT_SINGLE_BUFFER


# --------------------------------------------------------------------------
# Fused linear kernel: out = act(x @ w + bias) + sum(residuals)
# --------------------------------------------------------------------------
def _make_linear_kernel(has_bias, n_residuals, activation, matmul_dtype):
    def kernel(*refs):
        x_ref, w_ref = refs[0], refs[1]
        pos = 2
        b_ref = None
        if has_bias:
            b_ref = refs[pos]
            pos += 1
        res_refs = refs[pos:pos + n_residuals]
        o_ref = refs[pos + n_residuals]

        x = x_ref[...]
        if matmul_dtype is not None:
            x = x.astype(matmul_dtype)              # bf16 MXU operands
        acc = jnp.dot(x, w_ref[...], preferred_element_type=jnp.float32)
        if b_ref is not None:
            acc = acc + b_ref[...].astype(jnp.float32)
        if activation == "gelu":
            # TODO(synk): torch nn.GELU() defaults to exact erf; tanh
            # approximation used here (EUP-friendly, ~1e-3 max abs diff).
            acc = jax.nn.gelu(acc, approximate=True)
        for r_ref in res_refs:
            acc = acc + r_ref[...].astype(jnp.float32)
        o_ref[...] = acc.astype(o_ref.dtype)

    return kernel


def _pick_tile_n(n_dim):
    """N tile: full if narrow, else the largest 128-multiple divisor <= 1024."""
    if n_dim <= 1024:
        return n_dim
    for cand in range(1024, 127, -128):
        if n_dim % cand == 0:
            return cand
    return 1024


def _pick_tile_m(m, k_dim, tile_n, *, x_itemsize, w_itemsize, n_residuals,
                 weight_bufs):
    """Largest row tile whose pipeline buffers fit the per-generation VMEM budget."""
    granule = 8 if x_itemsize >= 4 else 16          # f32 sublane 8, bf16 packs 16
    _, budget = _vmem_limits()
    fixed = weight_bufs * k_dim * tile_n * w_itemsize + 2 * tile_n * 4
    tile = min(1024, _round_up(m, granule))
    tile = max(_round_up(tile, granule), granule)

    def tile_bytes(t):
        return (2 * t * k_dim * x_itemsize                    # x, double-buffered
                + 2 * t * tile_n * x_itemsize                 # out, double-buffered
                + 2 * n_residuals * t * tile_n * x_itemsize   # residual streams
                + t * tile_n * 4)                             # f32 accumulator margin

    while tile > granule and fixed + tile_bytes(tile) > budget:
        tile = max(_round_up(tile // 2, granule), granule)
    return tile


def fused_linear(x2d, w, *, bias=None, residuals=(), activation=None,
                 matmul_dtype=None):
    """out = activation(x2d @ w + bias) + sum(residuals).

    x2d: (M, K); w: (K, N) input-major (no per-call transpose); bias: (N,) or
    None; residuals: tuple of (M, N) arrays streamed tile-by-tile.
    """
    m, k_dim = x2d.shape
    k2, n_dim = w.shape
    assert k2 == k_dim
    # All feature dims of this module (512/1536/2048) are multiples of 128, so
    # outputs stay lane-dense (unmasked full-lane stores) and MXU tiles are full.
    assert k_dim % 128 == 0 and n_dim % 128 == 0

    out_dtype = x2d.dtype
    residuals = tuple(residuals)

    if matmul_dtype is not None and w.dtype != matmul_dtype:
        w = w.astype(matmul_dtype)                  # halves weight DMA (bf16)

    tile_n = _pick_tile_n(n_dim)
    n_tiles = pl.cdiv(n_dim, tile_n)

    w_invariant = (n_tiles == 1) and _weight_single_buffer_supported()
    weight_bufs = 1 if w_invariant else 2

    tile_m = _pick_tile_m(
        m, k_dim, tile_n,
        x_itemsize=jnp.dtype(out_dtype).itemsize,
        w_itemsize=jnp.dtype(w.dtype).itemsize,
        n_residuals=len(residuals), weight_bufs=weight_bufs)
    row_tiles = pl.cdiv(m, tile_m)                  # no explicit padding of x/residuals
    grid = (row_tiles, n_tiles)

    if w_invariant:
        w_spec = pl.BlockSpec((k_dim, tile_n), lambda i, j: (0, 0),
                              pipeline_mode=pl.Buffered(1))
    else:
        w_spec = pl.BlockSpec((k_dim, tile_n), lambda i, j: (0, j))

    inputs = [x2d, w]
    in_specs = [pl.BlockSpec((tile_m, k_dim), lambda i, j: (i, 0)), w_spec]
    if bias is not None:
        inputs.append(bias.reshape(1, n_dim))
        if n_tiles == 1 and _weight_single_buffer_supported():
            b_spec = pl.BlockSpec((1, tile_n), lambda i, j: (0, 0),
                                  pipeline_mode=pl.Buffered(1))
        else:
            b_spec = pl.BlockSpec((1, tile_n), lambda i, j: (0, j))
        in_specs.append(b_spec)
    for r in residuals:
        inputs.append(r)
        in_specs.append(pl.BlockSpec((tile_m, tile_n), lambda i, j: (i, j)))

    kernel = _make_linear_kernel(bias is not None, len(residuals), activation,
                                 matmul_dtype)

    return pl.pallas_call(
        kernel,
        out_shape=jax.ShapeDtypeStruct((m, n_dim), out_dtype),
        grid_spec=pltpu.PrefetchScalarGridSpec(
            num_scalar_prefetch=0,
            grid=grid,
            in_specs=in_specs,
            out_specs=pl.BlockSpec((tile_m, tile_n), lambda i, j: (i, j)),
        ),
        compiler_params=pltpu.CompilerParams(
            dimension_semantics=("parallel", "parallel"),
            vmem_limit_bytes=_vmem_limit(),
        ),
    )(*inputs)


# --------------------------------------------------------------------------
# Attention core: per-batch, all heads in one grid step, lane-dense output
# --------------------------------------------------------------------------
def _attention_kernel(q_ref, k_ref, v_ref, o_ref, *, scale, seq_len, heads,
                      matmul_dtype):
    q = q_ref[0].astype(jnp.float32)          # (S_pad, H, D) straight from qkv memory
    k = k_ref[0].astype(jnp.float32)
    v = v_ref[0]

    # qk_norm: L2-normalize per head vector — single rsqrt (EUP), no sqrt+div.
    qn = q * jax.lax.rsqrt(
        jnp.maximum(jnp.sum(q * q, axis=-1, keepdims=True), _QK_NORM_EPS_SQ))
    kn = k * jax.lax.rsqrt(
        jnp.maximum(jnp.sum(k * k, axis=-1, keepdims=True), _QK_NORM_EPS_SQ))
    qn = qn.astype(matmul_dtype)
    kn = kn.astype(matmul_dtype)
    vc = v.astype(matmul_dtype)

    s_pad = q.shape[0]
    row = jax.lax.broadcasted_iota(jnp.int32, (s_pad, s_pad), 0)
    col = jax.lax.broadcasted_iota(jnp.int32, (s_pad, s_pad), 1)
    mask = (row >= col) & (col < seq_len)

    outs = []
    for h in range(heads):                    # static unroll; all heads per grid step
        s_h = jax.lax.dot_general(            # q_h @ k_h^T, no materialized transpose
            qn[:, h, :], kn[:, h, :], (((1,), (1,)), ((), ())),
            preferred_element_type=jnp.float32) * scale            # (S, S) f32
        s_h = jnp.where(mask, s_h, _NEG_INF)
        m_h = jnp.max(s_h, axis=-1, keepdims=True)
        p_h = jnp.exp(s_h - m_h)
        p_h = p_h / jnp.sum(p_h, axis=-1, keepdims=True)           # exact divide
        outs.append(jnp.dot(p_h.astype(matmul_dtype), vc[:, h, :],
                            preferred_element_type=jnp.float32))
    # one lane-dense (S_pad, H*D = 512) slab -> unmasked full-lane stores
    out = jnp.concatenate(outs, axis=-1)
    o_ref[0] = out.astype(o_ref.dtype)


def attention_core(qkv4, *, heads, dim_head, scale, seq_len, matmul_dtype):
    """qkv4: (B, S_pad, 3*H, D) — a free reshape of the (M, 3*H*D) qkv matrix.

    Returns (B, S_pad, H*D) attention output in the (h d) column order the
    out-projection consumes directly (free reshape to (M, H*D)).
    """
    b, s_pad, three_h, d = qkv4.shape
    assert three_h == 3 * heads and d == dim_head
    inner = heads * dim_head
    assert inner % 128 == 0 and s_pad % 8 == 0

    kernel = functools.partial(_attention_kernel, scale=scale, seq_len=seq_len,
                               heads=heads, matmul_dtype=matmul_dtype)
    qkv_block = (1, s_pad, heads, dim_head)
    return pl.pallas_call(
        kernel,
        out_shape=jax.ShapeDtypeStruct((b, s_pad, inner), qkv4.dtype),
        grid_spec=pltpu.PrefetchScalarGridSpec(
            num_scalar_prefetch=0,
            grid=(b,),
            in_specs=[
                pl.BlockSpec(qkv_block, lambda i: (i, 0, 0, 0)),   # q heads
                pl.BlockSpec(qkv_block, lambda i: (i, 0, 1, 0)),   # k heads
                pl.BlockSpec(qkv_block, lambda i: (i, 0, 2, 0)),   # v heads
            ],
            out_specs=pl.BlockSpec((1, s_pad, inner), lambda i: (i, 0, 0)),
        ),
        compiler_params=pltpu.CompilerParams(
            dimension_semantics=("parallel",),
            vmem_limit_bytes=_vmem_limit(),
        ),
    )(qkv4, qkv4, qkv4)


# --------------------------------------------------------------------------
# Parameters and full forward
# --------------------------------------------------------------------------
def init_params(key, dim=512, dim_head=64, heads=8, ffn_mult=4,
                dtype=jnp.float32):
    inner = dim_head * heads
    hidden = dim * ffn_mult
    ks = jax.random.split(key, 6)

    def linear_w(k, fan_in, fan_out):
        # nn.Linear init U(-1/sqrt(fan_in), 1/sqrt(fan_in)); stored input-major
        # (fan_in, fan_out) so the kernels never transpose the weight.
        bound = 1.0 / math.sqrt(fan_in)
        return jax.random.uniform(k, (fan_in, fan_out), dtype,
                                  minval=-bound, maxval=bound)

    return {
        "w_qkv": linear_w(ks[0], dim, 3 * inner),   # fused to_q | to_k | to_v (no bias)
        "w_out": linear_w(ks[1], inner, dim),       # to_out (no bias)
        "w_ff1": linear_w(ks[2], dim, hidden),
        "b_ff1": jax.random.uniform(ks[3], (hidden,), dtype,
                                    minval=-1.0 / math.sqrt(dim),
                                    maxval=1.0 / math.sqrt(dim)),
        "w_ff2": linear_w(ks[4], hidden, dim),
        "b_ff2": jax.random.uniform(ks[5], (dim,), dtype,
                                    minval=-1.0 / math.sqrt(hidden),
                                    maxval=1.0 / math.sqrt(hidden)),
    }


def multimodal_encoder_forward(x, params, *, heads=8, dim_head=64,
                               qk_norm_scale=10.0,
                               matmul_dtype=jnp.bfloat16):
    """skip = x; x1 = attn(x) + skip; x2 = ffn(x1) + x1; return x2 + skip."""
    b, s, dim = x.shape
    inner = heads * dim_head

    # single up-front pad of seq to a sublane multiple (no-op when s % 8 == 0)
    s_pad = _round_up(s, 8)
    if s_pad != s:
        x = jnp.pad(x, ((0, 0), (0, s_pad - s), (0, 0)))
    m = b * s_pad
    x2d = x.reshape(m, dim)

    # --- attention ---
    qkv = fused_linear(x2d, params["w_qkv"], matmul_dtype=matmul_dtype)  # (M, 3*inner)
    # free reshape (row-major compatible) -> heads addressed by BlockSpec, no transposes
    qkv4 = qkv.reshape(b, s_pad, 3 * heads, dim_head)
    attn = attention_core(qkv4, heads=heads, dim_head=dim_head,
                          scale=qk_norm_scale, seq_len=s,
                          matmul_dtype=matmul_dtype)                     # (b, s_pad, inner)
    attn2d = attn.reshape(m, inner)                                      # free reshape

    # out projection fused with the first residual: x1 = attn @ Wo + skip
    x1 = fused_linear(attn2d, params["w_out"], residuals=(x2d,),
                      matmul_dtype=matmul_dtype)

    # --- feed-forward, second matmul fused with both residuals:
    #     out = ffn(x1) + x1 + skip ---
    h = fused_linear(x1, params["w_ff1"], bias=params["b_ff1"],
                     activation="gelu", matmul_dtype=matmul_dtype)
    out2d = fused_linear(h, params["w_ff2"], bias=params["b_ff2"],
                         residuals=(x1, x2d), matmul_dtype=matmul_dtype)

    out = out2d.reshape(b, s_pad, dim)
    return out[:, :s] if s_pad != s else out


# --------------------------------------------------------------------------
# Pure-JAX reference (matmul_dtype=None -> plain f32 module semantics;
# matmul_dtype=bf16 -> precision-mirrors the kernels' MXU operands)
# --------------------------------------------------------------------------
def _reference(x, params, *, heads=8, dim_head=64, qk_norm_scale=10.0,
               matmul_dtype=None):
    b, s, dim = x.shape
    inner = heads * dim_head
    x2d = x.reshape(b * s, dim).astype(jnp.float32)

    def mm(a, w):
        if matmul_dtype is not None:
            a = a.astype(matmul_dtype)
            w = w.astype(matmul_dtype)
        return jnp.dot(a, w, preferred_element_type=jnp.float32)

    qkv = mm(x2d, params["w_qkv"])

    def split_heads(t):
        return t.reshape(b, s, heads, dim_head).transpose(0, 2, 1, 3)

    q = split_heads(qkv[:, :inner])
    k = split_heads(qkv[:, inner:2 * inner])
    v = split_heads(qkv[:, 2 * inner:])

    def l2n(t):
        return t * jax.lax.rsqrt(
            jnp.maximum(jnp.sum(t * t, -1, keepdims=True), _QK_NORM_EPS_SQ))

    q, k = l2n(q), l2n(k)
    if matmul_dtype is not None:
        q = q.astype(matmul_dtype)
        k = k.astype(matmul_dtype)
    scores = jnp.einsum("bhqd,bhkd->bhqk", q, k,
                        preferred_element_type=jnp.float32) * qk_norm_scale
    row = jax.lax.broadcasted_iota(jnp.int32, (s, s), 0)
    col = jax.lax.broadcasted_iota(jnp.int32, (s, s), 1)
    scores = jnp.where(row >= col, scores, _NEG_INF)
    p = jax.nn.softmax(scores, axis=-1)
    if matmul_dtype is not None:
        p = p.astype(matmul_dtype)
        v = v.astype(matmul_dtype)
    attn = jnp.einsum("bhqk,bhkd->bhqd", p, v,
                      preferred_element_type=jnp.float32)
    attn2d = attn.transpose(0, 2, 1, 3).reshape(b * s, inner)

    x1 = mm(attn2d, params["w_out"]) + x2d
    h = jax.nn.gelu(mm(x1, params["w_ff1"]) + params["b_ff1"], approximate=True)
    out2d = mm(h, params["w_ff2"]) + params["b_ff2"] + x1 + x2d
    return out2d.reshape(b, s, dim)


if __name__ == "__main__":
    dim, heads, dim_head = 512, 8, 64      # MultiModalEncoder defaults
    batch, seq = 2, 8

    key = jax.random.PRNGKey(0)
    kx, kp = jax.random.split(key)
    x = jax.random.normal(kx, (batch, seq, dim), dtype=jnp.float32)
    params = init_params(kp, dim=dim, dim_head=dim_head, heads=heads)

    # 1) f32 MXU path — tight check against the pure-f32 reference.
    out_f32 = multimodal_encoder_forward(x, params, heads=heads,
                                         dim_head=dim_head,
                                         matmul_dtype=jnp.float32)
    out_f32 = jax.block_until_ready(out_f32)
    assert out_f32.shape == (batch, seq, dim)
    ref_f32 = _reference(x, params, heads=heads, dim_head=dim_head)
    err_f32 = float(jnp.max(jnp.abs(out_f32 - ref_f32)))
    assert jnp.allclose(out_f32, ref_f32, atol=5e-3, rtol=5e-3), err_f32

    # 2) bf16 MXU path (default perf path) — check against a reference that
    #    mirrors the same mixed-precision matmul operands.
    out_bf16 = multimodal_encoder_forward(x, params, heads=heads,
                                          dim_head=dim_head)
    out_bf16 = jax.block_until_ready(out_bf16)
    assert out_bf16.shape == (batch, seq, dim)
    ref_bf16 = _reference(x, params, heads=heads, dim_head=dim_head,
                          matmul_dtype=jnp.bfloat16)
    err_bf16 = float(jnp.max(jnp.abs(out_bf16 - ref_bf16)))
    assert jnp.allclose(out_bf16, ref_bf16, atol=1e-2, rtol=1e-2), err_bf16

    print("KERNEL_OK")
</pallas_src>

<mosaic_0001>
module attributes {stable_mosaic.version = 11 : i64} {
  func.func @kernel(%arg0: i32, %arg1: i32, %arg2: memref<16x512xf32, #tpu.memory_space<vmem>>, %arg3: memref<512x768xf32, #tpu.memory_space<vmem>>, %arg4: memref<16x768xf32, #tpu.memory_space<vmem>>) attributes {dimension_semantics = [#tpu.dimension_semantics<parallel>, #tpu.dimension_semantics<parallel>], iteration_bounds = array<i64: 1, 2>, scalar_prefetch = 0 : i64, scratch_operands = 0 : i64, tpu.core_type = #tpu.core_type<tc>, window_params = [{transform_indices = @transform_0, window_bounds = array<i64: 16, 512>}, {transform_indices = @transform_1, window_bounds = array<i64: 512, 768>}, {transform_indices = @transform_2, window_bounds = array<i64: 16, 768>}]} {
    %c0 = arith.constant 0 : index
    %c0_0 = arith.constant 0 : index
    %0 = vector.load %arg2[%c0, %c0_0] : memref<16x512xf32, #tpu.memory_space<vmem>>, vector<16x512xf32>
    %c0_1 = arith.constant 0 : index
    %c0_2 = arith.constant 0 : index
    %1 = vector.load %arg3[%c0_1, %c0_2] : memref<512x768xf32, #tpu.memory_space<vmem>>, vector<512x768xf32>
    %cst = arith.constant dense<0.000000e+00> : vector<16x768xf32>
    %2 = tpu.matmul %0, %1, %cst {dimension_numbers = #tpu.dot_dimension_numbers<[1], [0], [0], [1], [0, 0, 1, 1], [], []>} : vector<16x512xf32>, vector<512x768xf32>, vector<16x768xf32> -> vector<16x768xf32>
    %c0_3 = arith.constant 0 : index
    %c0_4 = arith.constant 0 : index
    %3 = vector.load %arg4[%c0_3, %c0_4] : memref<16x768xf32, #tpu.memory_space<vmem>>, vector<16x768xf32>
    tpu.vector_store %arg4[%c0_3, %c0_4], %2 {strides = array<i32>} : memref<16x768xf32, #tpu.memory_space<vmem>>, vector<16x768xf32>,
    return
  }
  func.func @transform_0(%arg0: i32, %arg1: i32) -> (i32, i32) {
    %c0_i32 = arith.constant 0 : i32
    %c0_i32_0 = arith.constant 0 : i32
    return %arg0, %c0_i32 : i32, i32
  }
  func.func @transform_1(%arg0: i32, %arg1: i32) -> (i32, i32) {
    %c0_i32 = arith.constant 0 : i32
    %c0_i32_0 = arith.constant 0 : i32
    return %c0_i32, %arg1 : i32, i32
  }
  func.func @transform_2(%arg0: i32, %arg1: i32) -> (i32, i32) {
    %c0_i32 = arith.constant 0 : i32
    return %arg0, %arg1 : i32, i32
  }
}

</mosaic_0001>

<llo_original>
// kernel: tpu_custom_call.1
$region0: #{tpu_custom_call.1}
  #allocation0 [shape = 'u32[]', space=smem, size = 0x4, offset = 0x4, fixed_abs, tag = 'smem constant byte address 0x4 - core index']
  #allocation1 [shape = 'u32[144,128]{1,0:T(1,128)}', space=vmem, size = 0x12000, scoped, tag = 'internal scratch']
  %s0 = inlined_call_operand.hbm [shape: f32[16,512], index: 0, kind: input, shape index: {}]
  %s1 = inlined_call_operand.hbm [shape: f32[512,1536], index: 1, kind: input, shape index: {}]
  %s2 = inlined_call_operand.hbm [shape: f32[16,1536], index: 2, kind: output, shape index: {}]
  %s3 = sld [smem:[#allocation0]]
  $region49: #{tpu_custom_call.1} parent=0
    _
  %s5 = ssub.s32 1, %s3
  %s6 = scalar_select 0, %s5, %s3
  $region1: #{tpu_custom_call.1} parent=0
    #allocation2 [shape = 'u8[32768]{0}', space=vmem, size = 0x8000, scoped, tag = 'input window, operand 0, single buffered']
    #allocation3 [shape = 's32[2]{0}', space=sflag, size = 0x8, scoped, tag = 'scoped memory for tpu_custom_call.1']
    #allocation4 [shape = 's32[2]{0}', space=sflag, size = 0x8, scoped, tag = 'scoped memory for tpu_custom_call.1']
    #allocation5 [shape = 'u8[3145728]{0}', space=vmem, size = 0x300000, scoped, tag = 'input window, operand 1']
    #allocation6 [shape = 's32[2]{0}', space=sflag, size = 0x8, scoped, tag = 'scoped memory for tpu_custom_call.1']
    #allocation7 [shape = 'u8[98304]{0}', space=vmem, size = 0x18000, scoped, tag = 'output window, operand 0']
    %7 = vsyncpa [#allocation3], 0
    %8 = vsyncpa [#allocation6], 0
    %s9 = scalar_lea.sflag [#allocation6], 1
    %10 = vsyncpa %s9, 0
    %11 = vsyncpa [#allocation4], 0
    %s12 = scalar_lea.sflag [#allocation4], 1
    %13 = vsyncpa %s12, 0
    loop: start=0, step=1, limit=4
    $region2: #{tpu_custom_call.1} parent=1 // loop_pre_header
      _
    $region3: #{tpu_custom_call.1} parent=1 // loop_header
      %s15 = sphi 0, %s19
      %p16 = scmp.ge.s32.totalorder %s15, 4
      %s22 = sphi 0, %s34
      %s23 = sphi 0, %s30
      %s24 = sphi 0, %s22
      %s25 = sphi 0, %s23
      %s26 = sphi 0, %s24
      %s27 = sphi 0, %s25
      %s37 = sphi 0, %s39
      %s40 = sphi 0, %s37
      %s41 = sphi 0, %s40
      %s57 = sphi 0, %s41
      %s63 = sphi 0, %s65
      %s66 = sphi 0, %s63
      %s67 = sphi 0, %s66
      %s83 = sphi 0, %s67
      %s91 = sphi 0, %s93
      %s94 = sphi 0, %s91
      %s95 = sphi 0, %s94
      %s111 = sphi 0, %s95
    $region4: #{tpu_custom_call.1} parent=1 // loop_header_branch
      %18 = sbr.rel (%p16) target = $region8
    $region5: #{tpu_custom_call.1} parent=1 // loop_body
      %s20 = ssub.s32 %s15, 1
      %s21 = ssub.s32 %s15, 2
      %s28 = sadd.s32 1, %s23
      %p29 = scmp.ge.s32.totalorder %s28, 2
      %s30 = scalar_select %p29, 0, %s28
      %s31 = sadd.s32 1, %s22
      %s32 = scalar_select %p29, %s31, %s22
      %p33 = scmp.ge.s32.totalorder %s32, 1
      %s34 = scalar_select %p33, 0, %s32
      %s35 = ssub.s32 %s22, %s34
      %p36 = scmp.eq.s32.totalorder %s35, 0
      %s38 = sadd.s32 %s37, 1
      %s39 = scalar_select %p36, %s37, %s38
      %p42 = pneg %p36
      %p43 = scmp.eq.s32.totalorder %s15, 1
      %p44 = por %p42, %p43
      %p45 = scmp.ne.s32.totalorder %s37, %s40
      %p46 = scmp.eq.s32.totalorder %s15, 0
      %p47 = por %p45, %p46
      %p48 = scmp.ne.s32.totalorder %s37, %s40
      %p49 = scmp.eq.s32.totalorder %s20, 1
      %p50 = por %p48, %p49
      %p51 = scmp.ne.s32.totalorder %s40, %s41
      %p52 = scmp.eq.s32.totalorder %s20, 0
      %p53 = por %p51, %p52
      %p54 = scmp.ne.s32.totalorder %s40, %s41
      %p55 = scmp.eq.s32.totalorder %s21, 1
      %p56 = por %p54, %p55
      %p58 = scmp.ne.s32.totalorder %s41, %s57
      %p59 = scmp.eq.s32.totalorder %s21, 0
      %p60 = por %p58, %p59
      %s61 = ssub.s32 %s23, %s30
      %p62 = scmp.eq.s32.totalorder %s61, 0
      %s64 = sadd.s32 %s63, 1
      %s65 = scalar_select %p62, %s63, %s64
      %p68 = pneg %p62
      %p69 = scmp.eq.s32.totalorder %s15, 1
      %p70 = por %p68, %p69
      %p71 = scmp.ne.s32.totalorder %s63, %s66
      %p72 = scmp.eq.s32.totalorder %s15, 0
      %p73 = por %p71, %p72
      %p74 = scmp.ne.s32.totalorder %s63, %s66
      %p75 = scmp.eq.s32.totalorder %s20, 1
      %p76 = por %p74, %p75
      %p77 = scmp.ne.s32.totalorder %s66, %s67
      %p78 = scmp.eq.s32.totalorder %s20, 0
      %p79 = por %p77, %p78
      %p80 = scmp.ne.s32.totalorder %s66, %s67
      %p81 = scmp.eq.s32.totalorder %s21, 1
      %p82 = por %p80, %p81
      %p84 = scmp.ne.s32.totalorder %s67, %s83
      %p85 = scmp.eq.s32.totalorder %s21, 0
      %p86 = por %p84, %p85
      %s87 = ssub.s32 %s22, %s34
      %s88 = ssub.s32 %s23, %s30
      %s89 = sor.u32 %s87, %s88
      %p90 = scmp.eq.s32.totalorder %s89, 0
      %s92 = sadd.s32 %s91, 1
      %s93 = scalar_select %p90, %s91, %s92
      %p96 = pneg %p90
      %p97 = scmp.eq.s32.totalorder %s15, 1
      %p98 = por %p96, %p97
      %p99 = scmp.ne.s32.totalorder %s91, %s94
      %p100 = scmp.eq.s32.totalorder %s15, 0
      %p101 = por %p99, %p100
      %p102 = scmp.ne.s32.totalorder %s91, %s94
      %p103 = scmp.eq.s32.totalorder %s20, 1
      %p104 = por %p102, %p103
      %p105 = scmp.ne.s32.totalorder %s94, %s95
      %p106 = scmp.eq.s32.totalorder %s20, 0
      %p107 = por %p105, %p106
      %p108 = scmp.ne.s32.totalorder %s94, %s95
      %p109 = scmp.eq.s32.totalorder %s21, 1
      %p110 = por %p108, %p109
      %p112 = scmp.ne.s32.totalorder %s95, %s111
      %p113 = scmp.eq.s32.totalorder %s21, 0
      %p114 = por %p112, %p113
      %p115 = scmp.le.s32.totalorder 1, %s15
      %p116 = scmp.lt.s32.totalorder %s15, 3
      %p117 = pnand %p115, %p116
      %p118 = pneg %p117
      // Predicated region
      $region9: #{tpu_custom_call.1} parent=5 // pred_check
        _
      $region10: #{tpu_custom_call.1} parent=5 // pred_check_branch
        %120 = sbr.rel (%p117) target = $region12
      $region11: #{tpu_custom_call.1} parent=5 // pred_region
        %s121 = ssub.s32 %s15, 1
        // Predicated region
        $region13: #{tpu_custom_call.1} parent=11 // pred_check
          %p122 = pneg %p53
        $region14: #{tpu_custom_call.1} parent=11 // pred_check_branch
          %124 = sbr.rel (%p122) target = $region16
        $region15: #{tpu_custom_call.1} parent=11 // pred_region
          %s125 = smul.u32 2, %s24
          %s127 = ssub.s32 1024, 1024
          %128 = vsyncadd [#allocation3], %s127
          %s129 = smul.addr %s125, 4
          %s130 = smul.addr %s129, 128
          %s131 = scalar_lea.hbm %s0, %s130
          %s132 = sshll.u32 [#allocation2], 4
          %s133 = int_to_ptr.vmem [resolvable:$true] %s132
          %138 = dma.hbm_to_vmem [thread:$0]  %s131, 1024, %s133, [#allocation3], 512, 512, 32
        $region16: #{tpu_custom_call.1} parent=11 // pred_fallthru
          _
      $region12: #{tpu_custom_call.1} parent=5 // pred_fallthru
        _
      %p139 = scmp.lt.s32.totalorder %s15, 2
      // Predicated region
      $region17: #{tpu_custom_call.1} parent=5 // pred_check
        %p140 = pneg %p139
      $region18: #{tpu_custom_call.1} parent=5 // pred_check_branch
        %142 = sbr.rel (%p140) target = $region20
      $region19: #{tpu_custom_call.1} parent=5 // pred_region
        // Predicated region
        $region21: #{tpu_custom_call.1} parent=19 // pred_check
          %p143 = pneg %p73
        $region22: #{tpu_custom_call.1} parent=19 // pred_check_branch
          %145 = sbr.rel (%p143) target = $region24
        $region23: #{tpu_custom_call.1} parent=19 // pred_region
          %s146 = sand.u32 %s63, 1
          %s147 = scalar_lea.sflag [#allocation6], %s146
          %s148 = sand.u32 %s63, 1
          %s149 = smul.addr %s148, 3072
          %s150 = scalar_lea.vmem [#allocation5], %s149
          %s151 = smul.u32 6, %s23
          %s153 = ssub.s32 49152, 49152
          %154 = vsyncadd %s147, %s153
          %s155 = smul.addr %s151, 128
          %s156 = scalar_lea.hbm %s1, %s155
          %s157 = sshll.u32 %s150, 4
          %s158 = int_to_ptr.vmem [resolvable:$true] %s157
          %163 = dma.hbm_to_vmem [thread:$0]  %s156, 49152, %s158, %s147, 1536, 768, 48
        $region24: #{tpu_custom_call.1} parent=19 // pred_fallthru
          _
      $region20: #{tpu_custom_call.1} parent=5 // pred_fallthru
        _
      %p164 = scmp.le.s32.totalorder 1, %s15
      %p165 = scmp.lt.s32.totalorder %s15, 3
      %p166 = pnand %p164, %p165
      %p167 = pneg %p166
      // Predicated region
      $region25: #{tpu_custom_call.1} parent=5 // pred_check
        _
      $region26: #{tpu_custom_call.1} parent=5 // pred_check_branch
        %169 = sbr.rel (%p166) target = $region28
      $region27: #{tpu_custom_call.1} parent=5 // pred_region
        %s170 = ssub.s32 %s15, 1
        // Predicated region
        $region29: #{tpu_custom_call.1} parent=27 // pred_check
          %p171 = pneg %p53
        $region30: #{tpu_custom_call.1} parent=27 // pred_check_branch
          %173 = sbr.rel (%p171) target = $region32
        $region31: #{tpu_custom_call.1} parent=27 // pred_region
          %174 = dma.done [#allocation3], 1024
        $region32: #{tpu_custom_call.1} parent=27 // pred_fallthru
          _
        %s175 = sand.u32 %s66, 1
        %s176 = scalar_lea.sflag [#allocation6], %s175
        %s177 = sand.u32 %s66, 1
        %s178 = smul.addr %s177, 3072
        %s179 = scalar_lea.vmem [#allocation5], %s178
        // Predicated region
        $region33: #{tpu_custom_call.1} parent=27 // pred_check
          %p180 = pneg %p79
        $region34: #{tpu_custom_call.1} parent=27 // pred_check_branch
          %182 = sbr.rel (%p180) target = $region36
        $region35: #{tpu_custom_call.1} parent=27 // pred_region
          %183 = dma.done %s176, 49152
        $region36: #{tpu_custom_call.1} parent=27 // pred_fallthru
          _
        %p184 = pneg %p53
        %p185 = pneg %p50
        %s186 = sand.u32 %s66, 1
        %s187 = scalar_lea.sflag [#allocation6], %s186
        %s188 = sand.u32 %s66, 1
        %s189 = smul.addr %s188, 3072
        %s190 = scalar_lea.vmem [#allocation5], %s189
        %p191 = pneg %p79
        %p192 = pneg %p76
        %p193 = pneg %p107
        %p194 = pneg %p104
        %s195 = sand.u32 %s94, 1
        %s196 = scalar_lea.sflag [#allocation4], %s195
        %s197 = sand.u32 %s94, 1
        %s198 = smul.addr %s197, 96
        %s199 = scalar_lea.vmem [#allocation7], %s198
        %s200 = smul.u32 2, %s24
        %s201 = smul.u32 6, %s25
        %s202 = smul.u32 2, %s24
        %s203 = smul.u32 6, %s25
        %v204 = vld [vmem:[#allocation2] sm:$0xff]
        %v205 = vld [vmem:[#allocation2 + $0x8] sm:$0xff]
        %v206 = vld [vmem:[#allocation2 + $0x10] sm:$0xff]
        %v207 = vld [vmem:[#allocation2 + $0x18] sm:$0xff]
        %v208 = vld [vmem:[#allocation2 + $0x20] sm:$0xff]
        %v209 = vld [vmem:[#allocation2 + $0x28] sm:$0xff]
        %v210 = vld [vmem:[#allocation2 + $0x30] sm:$0xff]
        %v211 = vld [vmem:[#allocation2 + $0x38] sm:$0xff]
        %v212 = vld [vmem:[%s179] sm:$0xff]
        %v213 = vld [vmem:[%s179 + $0x8] sm:$0xff]
        %v214 = vld [vmem:[%s179 + $0x10] sm:$0xff]
        %v215 = vld [vmem:[%s179 + $0x18] sm:$0xff]
        %v216 = vld [vmem:[%s179 + $0x20] sm:$0xff]
        %v217 = vld [vmem:[%s179 + $0x28] sm:$0xff]
        %v218 = vld [vmem:[%s179 + $0x30] sm:$0xff]
        %v219 = vld [vmem:[%s179 + $0x38] sm:$0xff]
        %v220 = vld [vmem:[%s179 + $0x40] sm:$0xff]
        %v221 = vld [vmem:[%s179 + $0x48] sm:$0xff]
        %v222 = vld [vmem:[%s179 + $0x50] sm:$0xff]
        %v223 = vld [vmem:[%s179 + $0x58] sm:$0xff]
        %v224 = vld [vmem:[%s179 + $0x60] sm:$0xff]
        %v225 = vld [vmem:[%s179 + $0x68] sm:$0xff]
        %v226 = vld [vmem:[%s179 + $0x70] sm:$0xff]
        %v227 = vld [vmem:[%s179 + $0x78] sm:$0xff]
        %v228 = vld [vmem:[%s179 + $0x80] sm:$0xff]
        %v229 = vld [vmem:[%s179 + $0x88] sm:$0xff]
        %v230 = vld [vmem:[%s179 + $0x90] sm:$0xff]
        %v231 = vld [vmem:[%s179 + $0x98] sm:$0xff]
        %v232 = vld [vmem:[%s179 + $0xa0] sm:$0xff]
        %v233 = vld [vmem:[%s179 + $0xa8] sm:$0xff]
        %v234 = vld [vmem:[%s179 + $0xb0] sm:$0xff]
        %v235 = vld [vmem:[%s179 + $0xb8] sm:$0xff]
        %v236 = vld [vmem:[%s179 + $0xc0] sm:$0xff]
        %v237 = vld [vmem:[%s179 + $0xc8] sm:$0xff]
        %v238 = vld [vmem:[%s179 + $0xd0] sm:$0xff]
        %v239 = vld [vmem:[%s179 + $0xd8] sm:$0xff]
        %v240 = vld [vmem:[%s179 + $0xe0] sm:$0xff]
        %v241 = vld [vmem:[%s179 + $0xe8] sm:$0xff]
        %v242 = vld [vmem:[%s179 + $0xf0] sm:$0xff]
        %v243 = vld [vmem:[%s179 + $0xf8] sm:$0xff]
        %v244 = vld [vmem:[%s179 + $0x100] sm:$0xff]
        %v245 = vld [vmem:[%s179 + $0x108] sm:$0xff]
        %v246 = vld [vmem:[%s179 + $0x110] sm:$0xff]
        %v247 = vld [vmem:[%s179 + $0x118] sm:$0xff]
        %v248 = vld [vmem:[%s179 + $0x120] sm:$0xff]
        %v249 = vld [vmem:[%s179 + $0x128] sm:$0xff]
        %v250 = vld [vmem:[%s179 + $0x130] sm:$0xff]
        %v251 = vld [vmem:[%s179 + $0x138] sm:$0xff]
        %v252 = vld [vmem:[%s179 + $0x140] sm:$0xff]
        %v253 = vld [vmem:[%s179 + $0x148] sm:$0xff]
        %v254 = vld [vmem:[%s179 + $0x150] sm:$0xff]
        %v255 = vld [vmem:[%s179 + $0x158] sm:$0xff]
        %v256 = vld [vmem:[%s179 + $0x160] sm:$0xff]
        %v257 = vld [vmem:[%s179 + $0x168] sm:$0xff]
        %v258 = vld [vmem:[%s179 + $0x170] sm:$0xff]
        %v259 = vld [vmem:[%s179 + $0x178] sm:$0xff]
        %v260 = vld [vmem:[%s179 + $0x180] sm:$0xff]
        %v261 = vld [vmem:[%s179 + $0x188] sm:$0xff]
        %v262 = vld [vmem:[%s179 + $0x190] sm:$0xff]
        %v263 = vld [vmem:[%s179 + $0x198] sm:$0xff]
        %v264 = vld [vmem:[%s179 + $0x1a0] sm:$0xff]
        %v265 = vld [vmem:[%s179 + $0x1a8] sm:$0xff]
        %v266 = vld [vmem:[%s179 + $0x1b0] sm:$0xff]
        %v267 = vld [vmem:[%s179 + $0x1b8] sm:$0xff]
        %v268 = vld [vmem:[%s179 + $0x1c0] sm:$0xff]
        %v269 = vld [vmem:[%s179 + $0x1c8] sm:$0xff]
        %v270 = vld [vmem:[%s179 + $0x1d0] sm:$0xff]
        %v271 = vld [vmem:[%s179 + $0x1d8] sm:$0xff]
        %v272 = vld [vmem:[%s179 + $0x1e0] sm:$0xff]
        %v273 = vld [vmem:[%s179 + $0x1e8] sm:$0xff]
        %v274 = vld [vmem:[%s179 + $0x1f0] sm:$0xff]
        %v275 = vld [vmem:[%s179 + $0x1f8] sm:$0xff]
        %v276 = vld [vmem:[%s179 + $0x200] sm:$0xff]
        %v277 = vld [vmem:[%s179 + $0x208] sm:$0xff]
        %v278 = vld [vmem:[%s179 + $0x210] sm:$0xff]
        %v279 = vld [vmem:[%s179 + $0x218] sm:$0xff]
        %v280 = vld [vmem:[%s179 + $0x220] sm:$0xff]
        %v281 = vld [vmem:[%s179 + $0x228] sm:$0xff]
        %v282 = vld [vmem:[%s179 + $0x230] sm:$0xff]
        %v283 = vld [vmem:[%s179 + $0x238] sm:$0xff]
        %v284 = vld [vmem:[%s179 + $0x240] sm:$0xff]
        %v285 = vld [vmem:[%s179 + $0x248] sm:$0xff]
        %v286 = vld [vmem:[%s179 + $0x250] sm:$0xff]
        %v287 = vld [vmem:[%s179 + $0x258] sm:$0xff]
        %v288 = vld [vmem:[%s179 + $0x260] sm:$0xff]
        %v289 = vld [vmem:[%s179 + $0x268] sm:$0xff]
        %v290 = vld [vmem:[%s179 + $0x270] sm:$0xff]
        %v291 = vld [vmem:[%s179 + $0x278] sm:$0xff]
        %v292 = vld [vmem:[%s179 + $0x280] sm:$0xff]
        %v293 = vld [vmem:[%s179 + $0x288] sm:$0xff]
        %v294 = vld [vmem:[%s179 + $0x290] sm:$0xff]
        %v295 = vld [vmem:[%s179 + $0x298] sm:$0xff]
        %v296 = vld [vmem:[%s179 + $0x2a0] sm:$0xff]
        %v297 = vld [vmem:[%s179 + $0x2a8] sm:$0xff]
        %v298 = vld [vmem:[%s179 + $0x2b0] sm:$0xff]
        %v299 = vld [vmem:[%s179 + $0x2b8] sm:$0xff]
        %v300 = vld [vmem:[%s179 + $0x2c0] sm:$0xff]
        %v301 = vld [vmem:[%s179 + $0x2c8] sm:$0xff]
        %v302 = vld [vmem:[%s179 + $0x2d0] sm:$0xff]
        %v303 = vld [vmem:[%s179 + $0x2d8] sm:$0xff]
        %v304 = vld [vmem:[%s179 + $0x2e0] sm:$0xff]
        %v305 = vld [vmem:[%s179 + $0x2e8] sm:$0xff]
        %v306 = vld [vmem:[%s179 + $0x2f0] sm:$0xff]
        %v307 = vld [vmem:[%s179 + $0x2f8] sm:$0xff]
        %v308 = vld [vmem:[%s179 + $0x300] sm:$0xff]
        %v309 = vld [vmem:[%s179 + $0x308] sm:$0xff]
        %v310 = vld [vmem:[%s179 + $0x310] sm:$0xff]
        %v311 = vld [vmem:[%s179 + $0x318] sm:$0xff]
        %v312 = vld [vmem:[%s179 + $0x320] sm:$0xff]
        %v313 = vld [vmem:[%s179 + $0x328] sm:$0xff]
        %v314 = vld [vmem:[%s179 + $0x330] sm:$0xff]
        %v315 = vld [vmem:[%s179 + $0x338] sm:$0xff]
        %v316 = vld [vmem:[%s179 + $0x340] sm:$0xff]
        %v317 = vld [vmem:[%s179 + $0x348] sm:$0xff]
        %v318 = vld [vmem:[%s179 + $0x350] sm:$0xff]
        %v319 = vld [vmem:[%s179 + $0x358] sm:$0xff]
        %v320 = vld [vmem:[%s179 + $0x360] sm:$0xff]
        %v321 = vld [vmem:[%s179 + $0x368] sm:$0xff]
        %v322 = vld [vmem:[%s179 + $0x370] sm:$0xff]
        %v323 = vld [vmem:[%s179 + $0x378] sm:$0xff]
        %v324 = vld [vmem:[%s179 + $0x380] sm:$0xff]
        %v325 = vld [vmem:[%s179 + $0x388] sm:$0xff]
        %v326 = vld [vmem:[%s179 + $0x390] sm:$0xff]
        %v327 = vld [vmem:[%s179 + $0x398] sm:$0xff]
        %v328 = vld [vmem:[%s179 + $0x3a0] sm:$0xff]
        %v329 = vld [vmem:[%s179 + $0x3a8] sm:$0xff]
        %v330 = vld [vmem:[%s179 + $0x3b0] sm:$0xff]
        %v331 = vld [vmem:[%s179 + $0x3b8] sm:$0xff]
        %v332 = vld [vmem:[%s179 + $0x3c0] sm:$0xff]
        %v333 = vld [vmem:[%s179 + $0x3c8] sm:$0xff]
        %v334 = vld [vmem:[%s179 + $0x3d0] sm:$0xff]
        %v335 = vld [vmem:[%s179 + $0x3d8] sm:$0xff]
        %v336 = vld [vmem:[%s179 + $0x3e0] sm:$0xff]
        %v337 = vld [vmem:[%s179 + $0x3e8] sm:$0xff]
        %v338 = vld [vmem:[%s179 + $0x3f0] sm:$0xff]
        %v339 = vld [vmem:[%s179 + $0x3f8] sm:$0xff]
        %v340 = vld [vmem:[%s179 + $0x400] sm:$0xff]
        %v341 = vld [vmem:[%s179 + $0x408] sm:$0xff]
        %v342 = vld [vmem:[%s179 + $0x410] sm:$0xff]
        %v343 = vld [vmem:[%s179 + $0x418] sm:$0xff]
        %v344 = vld [vmem:[%s179 + $0x420] sm:$0xff]
        %v345 = vld [vmem:[%s179 + $0x428] sm:$0xff]
        %v346 = vld [vmem:[%s179 + $0x430] sm:$0xff]
        %v347 = vld [vmem:[%s179 + $0x438] sm:$0xff]
        %v348 = vld [vmem:[%s179 + $0x440] sm:$0xff]
        %v349 = vld [vmem:[%s179 + $0x448] sm:$0xff]
        %v350 = vld [vmem:[%s179 + $0x450] sm:$0xff]
        %v351 = vld [vmem:[%s179 + $0x458] sm:$0xff]
        %v352 = vld [vmem:[%s179 + $0x460] sm:$0xff]
        %v353 = vld [vmem:[%s179 + $0x468] sm:$0xff]
        %v354 = vld [vmem:[%s179 + $0x470] sm:$0xff]
        %v355 = vld [vmem:[%s179 + $0x478] sm:$0xff]
        %v356 = vld [vmem:[%s179 + $0x480] sm:$0xff]
        %v357 = vld [vmem:[%s179 + $0x488] sm:$0xff]
        %v358 = vld [vmem:[%s179 + $0x490] sm:$0xff]
        %v359 = vld [vmem:[%s179 + $0x498] sm:$0xff]
        %v360 = vld [vmem:[%s179 + $0x4a0] sm:$0xff]
        %v361 = vld [vmem:[%s179 + $0x4a8] sm:$0xff]
        %v362 = vld [vmem:[%s179 + $0x4b0] sm:$0xff]
        %v363 = vld [vmem:[%s179 + $0x4b8] sm:$0xff]
        %v364 = vld [vmem:[%s179 + $0x4c0] sm:$0xff]
        %v365 = vld [vmem:[%s179 + $0x4c8] sm:$0xff]
        %v366 = vld [vmem:[%s179 + $0x4d0] sm:$0xff]
        %v367 = vld [vmem:[%s179 + $0x4d8] sm:$0xff]
        %v368 = vld [vmem:[%s179 + $0x4e0] sm:$0xff]
        %v369 = vld [vmem:[%s179 + $0x4e8] sm:$0xff]
        %v370 = vld [vmem:[%s179 + $0x4f0] sm:$0xff]
        %v371 = vld [vmem:[%s179 + $0x4f8] sm:$0xff]
        %v372 = vld [vmem:[%s179 + $0x500] sm:$0xff]
        %v373 = vld [vmem:[%s179 + $0x508] sm:$0xff]
        %v374 = vld [vmem:[%s179 + $0x510] sm:$0xff]
        %v375 = vld [vmem:[%s179 + $0x518] sm:$0xff]
        %v376 = vld [vmem:[%s179 + $0x520] sm:$0xff]
        %v377 = vld [vmem:[%s179 + $0x528] sm:$0xff]
        %v378 = vld [vmem:[%s179 + $0x530] sm:$0xff]
        %v379 = vld [vmem:[%s179 + $0x538] sm:$0xff]
        %v380 = vld [vmem:[%s179 + $0x540] sm:$0xff]
        %v381 = vld [vmem:[%s179 + $0x548] sm:$0xff]
        %v382 = vld [vmem:[%s179 + $0x550] sm:$0xff]
        %v383 = vld [vmem:[%s179 + $0x558] sm:$0xff]
        %v384 = vld [vmem:[%s179 + $0x560] sm:$0xff]
        %v385 = vld [vmem:[%s179 + $0x568] sm:$0xff]
        %v386 = vld [vmem:[%s179 + $0x570] sm:$0xff]
        %v387 = vld [vmem:[%s179 + $0x578] sm:$0xff]
        %v388 = vld [vmem:[%s179 + $0x580] sm:$0xff]
        %v389 = vld [vmem:[%s179 + $0x588] sm:$0xff]
        %v390 = vld [vmem:[%s179 + $0x590] sm:$0xff]
        %v391 = vld [vmem:[%s179 + $0x598] sm:$0xff]
        %v392 = vld [vmem:[%s179 + $0x5a0] sm:$0xff]
        %v393 = vld [vmem:[%s179 + $0x5a8] sm:$0xff]
        %v394 = vld [vmem:[%s179 + $0x5b0] sm:$0xff]
        %v395 = vld [vmem:[%s179 + $0x5b8] sm:$0xff]
        %v396 = vld [vmem:[%s179 + $0x5c0] sm:$0xff]
        %v397 = vld [vmem:[%s179 + $0x5c8] sm:$0xff]
        %v398 = vld [vmem:[%s179 + $0x5d0] sm:$0xff]
        %v399 = vld [vmem:[%s179 + $0x5d8] sm:$0xff]
        %v400 = vld [vmem:[%s179 + $0x5e0] sm:$0xff]
        %v401 = vld [vmem:[%s179 + $0x5e8] sm:$0xff]
        %v402 = vld [vmem:[%s179 + $0x5f0] sm:$0xff]
        %v403 = vld [vmem:[%s179 + $0x5f8] sm:$0xff]
        %v404 = vld [vmem:[%s179 + $0x600] sm:$0xff]
        %v405 = vld [vmem:[%s179 + $0x608] sm:$0xff]
        %v406 = vld [vmem:[%s179 + $0x610] sm:$0xff]
        %v407 = vld [vmem:[%s179 + $0x618] sm:$0xff]
        %v408 = vld [vmem:[%s179 + $0x620] sm:$0xff]
        %v409 = vld [vmem:[%s179 + $0x628] sm:$0xff]
        %v410 = vld [vmem:[%s179 + $0x630] sm:$0xff]
        %v411 = vld [vmem:[%s179 + $0x638] sm:$0xff]
        %v412 = vld [vmem:[%s179 + $0x640] sm:$0xff]
        %v413 = vld [vmem:[%s179 + $0x648] sm:$0xff]
        %v414 = vld [vmem:[%s179 + $0x650] sm:$0xff]
        %v415 = vld [vmem:[%s179 + $0x658] sm:$0xff]
        %v416 = vld [vmem:[%s179 + $0x660] sm:$0xff]
        %v417 = vld [vmem:[%s179 + $0x668] sm:$0xff]
        %v418 = vld [vmem:[%s179 + $0x670] sm:$0xff]
        %v419 = vld [vmem:[%s179 + $0x678] sm:$0xff]
        %v420 = vld [vmem:[%s179 + $0x680] sm:$0xff]
        %v421 = vld [vmem:[%s179 + $0x688] sm:$0xff]
        %v422 = vld [vmem:[%s179 + $0x690] sm:$0xff]
        %v423 = vld [vmem:[%s179 + $0x698] sm:$0xff]
        %v424 = vld [vmem:[%s179 + $0x6a0] sm:$0xff]
        %v425 = vld [vmem:[%s179 + $0x6a8] sm:$0xff]
        %v426 = vld [vmem:[%s179 + $0x6b0] sm:$0xff]
        %v427 = vld [vmem:[%s179 + $0x6b8] sm:$0xff]
        %v428 = vld [vmem:[%s179 + $0x6c0] sm:$0xff]
        %v429 = vld [vmem:[%s179 + $0x6c8] sm:$0xff]
        %v430 = vld [vmem:[%s179 + $0x6d0] sm:$0xff]
        %v431 = vld [vmem:[%s179 + $0x6d8] sm:$0xff]
        %v432 = vld [vmem:[%s179 + $0x6e0] sm:$0xff]
        %v433 = vld [vmem:[%s179 + $0x6e8] sm:$0xff]
        %v434 = vld [vmem:[%s179 + $0x6f0] sm:$0xff]
        %v435 = vld [vmem:[%s179 + $0x6f8] sm:$0xff]
        %v436 = vld [vmem:[%s179 + $0x700] sm:$0xff]
        %v437 = vld [vmem:[%s179 + $0x708] sm:$0xff]
        %v438 = vld [vmem:[%s179 + $0x710] sm:$0xff]
        %v439 = vld [vmem:[%s179 + $0x718] sm:$0xff]
        %v440 = vld [vmem:[%s179 + $0x720] sm:$0xff]
        %v441 = vld [vmem:[%s179 + $0x728] sm:$0xff]
        %v442 = vld [vmem:[%s179 + $0x730] sm:$0xff]
        %v443 = vld [vmem:[%s179 + $0x738] sm:$0xff]
        %v444 = vld [vmem:[%s179 + $0x740] sm:$0xff]
        %v445 = vld [vmem:[%s179 + $0x748] sm:$0xff]
        %v446 = vld [vmem:[%s179 + $0x750] sm:$0xff]
        %v447 = vld [vmem:[%s179 + $0x758] sm:$0xff]
        %v448 = vld [vmem:[%s179 + $0x760] sm:$0xff]
        %v449 = vld [vmem:[%s179 + $0x768] sm:$0xff]
        %v450 = vld [vmem:[%s179 + $0x770] sm:$0xff]
        %v451 = vld [vmem:[%s179 + $0x778] sm:$0xff]
        %v452 = vld [vmem:[%s179 + $0x780] sm:$0xff]
        %v453 = vld [vmem:[%s179 + $0x788] sm:$0xff]
        %v454 = vld [vmem:[%s179 + $0x790] sm:$0xff]
        %v455 = vld [vmem:[%s179 + $0x798] sm:$0xff]
        %v456 = vld [vmem:[%s179 + $0x7a0] sm:$0xff]
        %v457 = vld [vmem:[%s179 + $0x7a8] sm:$0xff]
        %v458 = vld [vmem:[%s179 + $0x7b0] sm:$0xff]
        %v459 = vld [vmem:[%s179 + $0x7b8] sm:$0xff]
        %v460 = vld [vmem:[%s179 + $0x7c0] sm:$0xff]
        %v461 = vld [vmem:[%s179 + $0x7c8] sm:$0xff]
        %v462 = vld [vmem:[%s179 + $0x7d0] sm:$0xff]
        %v463 = vld [vmem:[%s179 + $0x7d8] sm:$0xff]
        %v464 = vld [vmem:[%s179 + $0x7e0] sm:$0xff]
        %v465 = vld [vmem:[%s179 + $0x7e8] sm:$0xff]
        %v466 = vld [vmem:[%s179 + $0x7f0] sm:$0xff]
        %v467 = vld [vmem:[%s179 + $0x7f8] sm:$0xff]
        %v468 = vld [vmem:[%s179 + $0x800] sm:$0xff]
        %v469 = vld [vmem:[%s179 + $0x808] sm:$0xff]
        %v470 = vld [vmem:[%s179 + $0x810] sm:$0xff]
        %v471 = vld [vmem:[%s179 + $0x818] sm:$0xff]
        %v472 = vld [vmem:[%s179 + $0x820] sm:$0xff]
        %v473 = vld [vmem:[%s179 + $0x828] sm:$0xff]
        %v474 = vld [vmem:[%s179 + $0x830] sm:$0xff]
        %v475 = vld [vmem:[%s179 + $0x838] sm:$0xff]
        %v476 = vld [vmem:[%s179 + $0x840] sm:$0xff]
        %v477 = vld [vmem:[%s179 + $0x848] sm:$0xff]
        %v478 = vld [vmem:[%s179 + $0x850] sm:$0xff]
        %v479 = vld [vmem:[%s179 + $0x858] sm:$0xff]
        %v480 = vld [vmem:[%s179 + $0x860] sm:$0xff]
        %v481 = vld [vmem:[%s179 + $0x868] sm:$0xff]
        %v482 = vld [vmem:[%s179 + $0x870] sm:$0xff]
        %v483 = vld [vmem:[%s179 + $0x878] sm:$0xff]
        %v484 = vld [vmem:[%s179 + $0x880] sm:$0xff]
        %v485 = vld [vmem:[%s179 + $0x888] sm:$0xff]
        %v486 = vld [vmem:[%s179 + $0x890] sm:$0xff]
        %v487 = vld [vmem:[%s179 + $0x898] sm:$0xff]
        %v488 = vld [vmem:[%s179 + $0x8a0] sm:$0xff]
        %v489 = vld [vmem:[%s179 + $0x8a8] sm:$0xff]
        %v490 = vld [vmem:[%s179 + $0x8b0] sm:$0xff]
        %v491 = vld [vmem:[%s179 + $0x8b8] sm:$0xff]
        %v492 = vld [vmem:[%s179 + $0x8c0] sm:$0xff]
        %v493 = vld [vmem:[%s179 + $0x8c8] sm:$0xff]
        %v494 = vld [vmem:[%s179 + $0x8d0] sm:$0xff]
        %v495 = vld [vmem:[%s179 + $0x8d8] sm:$0xff]
        %v496 = vld [vmem:[%s179 + $0x8e0] sm:$0xff]
        %v497 = vld [vmem:[%s179 + $0x8e8] sm:$0xff]
        %v498 = vld [vmem:[%s179 + $0x8f0] sm:$0xff]
        %v499 = vld [vmem:[%s179 + $0x8f8] sm:$0xff]
        %v500 = vld [vmem:[%s179 + $0x900] sm:$0xff]
        %v501 = vld [vmem:[%s179 + $0x908] sm:$0xff]
        %v502 = vld [vmem:[%s179 + $0x910] sm:$0xff]
        %v503 = vld [vmem:[%s179 + $0x918] sm:$0xff]
        %v504 = vld [vmem:[%s179 + $0x920] sm:$0xff]
        %v505 = vld [vmem:[%s179 + $0x928] sm:$0xff]
        %v506 = vld [vmem:[%s179 + $0x930] sm:$0xff]
        %v507 = vld [vmem:[%s179 + $0x938] sm:$0xff]
        %v508 = vld [vmem:[%s179 + $0x940] sm:$0xff]
        %v509 = vld [vmem:[%s179 + $0x948] sm:$0xff]
        %v510 = vld [vmem:[%s179 + $0x950] sm:$0xff]
        %v511 = vld [vmem:[%s179 + $0x958] sm:$0xff]
        %v512 = vld [vmem:[%s179 + $0x960] sm:$0xff]
        %v513 = vld [vmem:[%s179 + $0x968] sm:$0xff]
        %v514 = vld [vmem:[%s179 + $0x970] sm:$0xff]
        %v515 = vld [vmem:[%s179 + $0x978] sm:$0xff]
        %v516 = vld [vmem:[%s179 + $0x980] sm:$0xff]
        %v517 = vld [vmem:[%s179 + $0x988] sm:$0xff]
        %v518 = vld [vmem:[%s179 + $0x990] sm:$0xff]
        %v519 = vld [vmem:[%s179 + $0x998] sm:$0xff]
        %v520 = vld [vmem:[%s179 + $0x9a0] sm:$0xff]
        %v521 = vld [vmem:[%s179 + $0x9a8] sm:$0xff]
        %v522 = vld [vmem:[%s179 + $0x9b0] sm:$0xff]
        %v523 = vld [vmem:[%s179 + $0x9b8] sm:$0xff]
        %v524 = vld [vmem:[%s179 + $0x9c0] sm:$0xff]
        %v525 = vld [vmem:[%s179 + $0x9c8] sm:$0xff]
        %v526 = vld [vmem:[%s179 + $0x9d0] sm:$0xff]
        %v527 = vld [vmem:[%s179 + $0x9d8] sm:$0xff]
        %v528 = vld [vmem:[%s179 + $0x9e0] sm:$0xff]
        %v529 = vld [vmem:[%s179 + $0x9e8] sm:$0xff]
        %v530 = vld [vmem:[%s179 + $0x9f0] sm:$0xff]
        %v531 = vld [vmem:[%s179 + $0x9f8] sm:$0xff]
        %v532 = vld [vmem:[%s179 + $0xa00] sm:$0xff]
        %v533 = vld [vmem:[%s179 + $0xa08] sm:$0xff]
        %v534 = vld [vmem:[%s179 + $0xa10] sm:$0xff]
        %v535 = vld [vmem:[%s179 + $0xa18] sm:$0xff]
        %v536 = vld [vmem:[%s179 + $0xa20] sm:$0xff]
        %v537 = vld [vmem:[%s179 + $0xa28] sm:$0xff]
        %v538 = vld [vmem:[%s179 + $0xa30] sm:$0xff]
        %v539 = vld [vmem:[%s179 + $0xa38] sm:$0xff]
        %v540 = vld [vmem:[%s179 + $0xa40] sm:$0xff]
        %v541 = vld [vmem:[%s179 + $0xa48] sm:$0xff]
        %v542 = vld [vmem:[%s179 + $0xa50] sm:$0xff]
        %v543 = vld [vmem:[%s179 + $0xa58] sm:$0xff]
        %v544 = vld [vmem:[%s179 + $0xa60] sm:$0xff]
        %v545 = vld [vmem:[%s179 + $0xa68] sm:$0xff]
        %v546 = vld [vmem:[%s179 + $0xa70] sm:$0xff]
        %v547 = vld [vmem:[%s179 + $0xa78] sm:$0xff]
        %v548 = vld [vmem:[%s179 + $0xa80] sm:$0xff]
        %v549 = vld [vmem:[%s179 + $0xa88] sm:$0xff]
        %v550 = vld [vmem:[%s179 + $0xa90] sm:$0xff]
        %v551 = vld [vmem:[%s179 + $0xa98] sm:$0xff]
        %v552 = vld [vmem:[%s179 + $0xaa0] sm:$0xff]
        %v553 = vld [vmem:[%s179 + $0xaa8] sm:$0xff]
        %v554 = vld [vmem:[%s179 + $0xab0] sm:$0xff]
        %v555 = vld [vmem:[%s179 + $0xab8] sm:$0xff]
        %v556 = vld [vmem:[%s179 + $0xac0] sm:$0xff]
        %v557 = vld [vmem:[%s179 + $0xac8] sm:$0xff]
        %v558 = vld [vmem:[%s179 + $0xad0] sm:$0xff]
        %v559 = vld [vmem:[%s179 + $0xad8] sm:$0xff]
        %v560 = vld [vmem:[%s179 + $0xae0] sm:$0xff]
        %v561 = vld [vmem:[%s179 + $0xae8] sm:$0xff]
        %v562 = vld [vmem:[%s179 + $0xaf0] sm:$0xff]
        %v563 = vld [vmem:[%s179 + $0xaf8] sm:$0xff]
        %v564 = vld [vmem:[%s179 + $0xb00] sm:$0xff]
        %v565 = vld [vmem:[%s179 + $0xb08] sm:$0xff]
        %v566 = vld [vmem:[%s179 + $0xb10] sm:$0xff]
        %v567 = vld [vmem:[%s179 + $0xb18] sm:$0xff]
        %v568 = vld [vmem:[%s179 + $0xb20] sm:$0xff]
        %v569 = vld [vmem:[%s179 + $0xb28] sm:$0xff]
        %v570 = vld [vmem:[%s179 + $0xb30] sm:$0xff]
        %v571 = vld [vmem:[%s179 + $0xb38] sm:$0xff]
        %v572 = vld [vmem:[%s179 + $0xb40] sm:$0xff]
        %v573 = vld [vmem:[%s179 + $0xb48] sm:$0xff]
        %v574 = vld [vmem:[%s179 + $0xb50] sm:$0xff]
        %v575 = vld [vmem:[%s179 + $0xb58] sm:$0xff]
        %v576 = vld [vmem:[%s179 + $0xb60] sm:$0xff]
        %v577 = vld [vmem:[%s179 + $0xb68] sm:$0xff]
        %v578 = vld [vmem:[%s179 + $0xb70] sm:$0xff]
        %v579 = vld [vmem:[%s179 + $0xb78] sm:$0xff]
        %v580 = vld [vmem:[%s179 + $0xb80] sm:$0xff]
        %v581 = vld [vmem:[%s179 + $0xb88] sm:$0xff]
        %v582 = vld [vmem:[%s179 + $0xb90] sm:$0xff]
        %v583 = vld [vmem:[%s179 + $0xb98] sm:$0xff]
        %v584 = vld [vmem:[%s179 + $0xba0] sm:$0xff]
        %v585 = vld [vmem:[%s179 + $0xba8] sm:$0xff]
        %v586 = vld [vmem:[%s179 + $0xbb0] sm:$0xff]
        %v587 = vld [vmem:[%s179 + $0xbb8] sm:$0xff]
        %v588 = vld [vmem:[%s179 + $0xbc0] sm:$0xff]
        %v589 = vld [vmem:[%s179 + $0xbc8] sm:$0xff]
        %v590 = vld [vmem:[%s179 + $0xbd0] sm:$0xff]
        %v591 = vld [vmem:[%s179 + $0xbd8] sm:$0xff]
        %v592 = vld [vmem:[%s179 + $0xbe0] sm:$0xff]
        %v593 = vld [vmem:[%s179 + $0xbe8] sm:$0xff]
        %v594 = vld [vmem:[%s179 + $0xbf0] sm:$0xff]
        %v595 = vld [vmem:[%s179 + $0xbf8] sm:$0xff]
        %596 = vmatprep.subr.mxu0 %v213
        %597 = vmatpush1.msra.mxu0 %v212
        %598 = vmatprep.subr.mxu0 %v219
        %599 = vmatpush1.msra.mxu0 %v218
        %600 = vmatprep.subr.mxu0 %v225
        %601 = vmatpush1.msra.mxu0 %v224
        %602 = vmatprep.subr.mxu0 %v231
        %603 = vmatpush1.msra.mxu0 %v230
        %604 = vmatprep.subr.mxu0 %v237
        %605 = vmatpush1.msra.mxu0 %v236
        %606 = vmatprep.subr.mxu0 %v243
        %607 = vmatpush1.msra.mxu0 %v242
        %608 = vmatprep.subr.mxu0 %v249
        %609 = vmatpush1.msra.mxu0 %v248
        %610 = vmatprep.subr.mxu0 %v255
        %611 = vmatpush1.msra.mxu0 %v254
        %612 = vmatprep.subr.mxu0 %v261
        %613 = vmatpush1.msra.mxu0 %v260
        %614 = vmatprep.subr.mxu0 %v267
        %615 = vmatpush1.msra.mxu0 %v266
        %616 = vmatprep.subr.mxu0 %v273
        %617 = vmatpush1.msra.mxu0 %v272
        %618 = vmatprep.subr.mxu0 %v279
        %619 = vmatpush1.msra.mxu0 %v278
        %620 = vmatprep.subr.mxu0 %v285
        %621 = vmatpush1.msra.mxu0 %v284
        %622 = vmatprep.subr.mxu0 %v291
        %623 = vmatpush1.msra.mxu0 %v290
        %624 = vmatprep.subr.mxu0 %v297
        %625 = vmatpush1.msra.mxu0 %v296
        %626 = vmatprep.subr.mxu0 %v303
        %627 = vmatpush1.msra.mxu0 %v302
        %628 = vmatprep.subr.mxu0 %v309
        %629 = vmatpush1.msra.mxu0 %v308
        %630 = vmatprep.subr.mxu0 %v315
        %631 = vmatpush1.msra.mxu0 %v314
        %632 = vmatprep.subr.mxu0 %v321
        %633 = vmatpush1.msra.mxu0 %v320
        %634 = vmatprep.subr.mxu0 %v327
        %635 = vmatpush1.msra.mxu0 %v326
        %636 = vmatprep.subr.mxu0 %v333
        %637 = vmatpush1.msra.mxu0 %v332
        %638 = vmatprep.subr.mxu0 %v339
        %639 = vmatpush1.msra.mxu0 %v338
        %640 = vmatprep.subr.mxu0 %v345
        %641 = vmatpush1.msra.mxu0 %v344
        %642 = vmatprep.subr.mxu0 %v351
        %643 = vmatpush1.msra.mxu0 %v350
        %644 = vmatprep.subr.mxu0 %v357
        %645 = vmatpush1.msra.mxu0 %v356
        %646 = vmatprep.subr.mxu0 %v363
        %647 = vmatpush1.msra.mxu0 %v362
        %648 = vmatprep.subr.mxu0 %v369
        %649 = vmatpush1.msra.mxu0 %v368
        %650 = vmatprep.subr.mxu0 %v375
        %651 = vmatpush1.msra.mxu0 %v374
        %652 = vmatprep.subr.mxu0 %v381
        %653 = vmatpush1.msra.mxu0 %v380
        %654 = vmatprep.subr.mxu0 %v387
        %655 = vmatpush1.msra.mxu0 %v386
        %656 = vmatprep.subr.mxu0 %v393
        %657 = vmatpush1.msra.mxu0 %v392
        %658 = vmatprep.subr.mxu0 %v399
        %659 = vmatpush1.msra.mxu0 %v398
        %660 = vmatprep.mubr.f32.mxu0 %v205
        %661 = vmatmul.mubr.f32.gmra.mrb[0].mxu0 %v204
        %v662 = vpop.f32.mrb[0].mxu0
        %v663 = vadd.f32 0.0, %v662
        %v664 = vpop.f32.mrb[0].mxu0
        %v665 = vadd.f32 0.0, %v664
        %666 = vmatprep.mubr.f32.mxu0 %v209
        %667 = vmatmul.mubr.f32.gmra.mrb[0].mxu0 %v208
        %v668 = vpop.f32.mrb[0].mxu0
        %v669 = vadd.f32 0.0, %v668
        %v670 = vpop.f32.mrb[0].mxu0
        %v671 = vadd.f32 0.0, %v670
        %672 = vdwg.mxu0
        %673 = vmatprep.subr.mxu0 %v405
        %674 = vmatpush1.msra.mxu0 %v404
        %675 = vmatprep.subr.mxu0 %v411
        %676 = vmatpush1.msra.mxu0 %v410
        %677 = vmatprep.subr.mxu0 %v417
        %678 = vmatpush1.msra.mxu0 %v416
        %679 = vmatprep.subr.mxu0 %v423
        %680 = vmatpush1.msra.mxu0 %v422
        %681 = vmatprep.subr.mxu0 %v429
        %682 = vmatpush1.msra.mxu0 %v428
        %683 = vmatprep.subr.mxu0 %v435
        %684 = vmatpush1.msra.mxu0 %v434
        %685 = vmatprep.subr.mxu0 %v441
        %686 = vmatpush1.msra.mxu0 %v440
        %687 = vmatprep.subr.mxu0 %v447
        %688 = vmatpush1.msra.mxu0 %v446
        %689 = vmatprep.subr.mxu0 %v453
        %690 = vmatpush1.msra.mxu0 %v452
        %691 = vmatprep.subr.mxu0 %v459
        %692 = vmatpush1.msra.mxu0 %v458
        %693 = vmatprep.subr.mxu0 %v465
        %694 = vmatpush1.msra.mxu0 %v464
        %695 = vmatprep.subr.mxu0 %v471
        %696 = vmatpush1.msra.mxu0 %v470
        %697 = vmatprep.subr.mxu0 %v477
        %698 = vmatpush1.msra.mxu0 %v476
        %699 = vmatprep.subr.mxu0 %v483
        %700 = vmatpush1.msra.mxu0 %v482
        %701 = vmatprep.subr.mxu0 %v489
        %702 = vmatpush1.msra.mxu0 %v488
        %703 = vmatprep.subr.mxu0 %v495
        %704 = vmatpush1.msra.mxu0 %v494
        %705 = vmatprep.subr.mxu0 %v501
        %706 = vmatpush1.msra.mxu0 %v500
        %707 = vmatprep.subr.mxu0 %v507
        %708 = vmatpush1.msra.mxu0 %v506
        %709 = vmatprep.subr.mxu0 %v513
        %710 = vmatpush1.msra.mxu0 %v512
        %711 = vmatprep.subr.mxu0 %v519
        %712 = vmatpush1.msra.mxu0 %v518
        %713 = vmatprep.subr.mxu0 %v525
        %714 = vmatpush1.msra.mxu0 %v524
        %715 = vmatprep.subr.mxu0 %v531
        %716 = vmatpush1.msra.mxu0 %v530
        %717 = vmatprep.subr.mxu0 %v537
        %718 = vmatpush1.msra.mxu0 %v536
        %719 = vmatprep.subr.mxu0 %v543
        %720 = vmatpush1.msra.mxu0 %v542
        %721 = vmatprep.subr.mxu0 %v549
        %722 = vmatpush1.msra.mxu0 %v548
        %723 = vmatprep.subr.mxu0 %v555
        %724 = vmatpush1.msra.mxu0 %v554
        %725 = vmatprep.subr.mxu0 %v561
        %726 = vmatpush1.msra.mxu0 %v560
        %727 = vmatprep.subr.mxu0 %v567
        %728 = vmatpush1.msra.mxu0 %v566
        %729 = vmatprep.subr.mxu0 %v573
        %730 = vmatpush1.msra.mxu0 %v572
        %731 = vmatprep.subr.mxu0 %v579
        %732 = vmatpush1.msra.mxu0 %v578
        %733 = vmatprep.subr.mxu0 %v585
        %734 = vmatpush1.msra.mxu0 %v584
        %735 = vmatprep.subr.mxu0 %v591
        %736 = vmatpush1.msra.mxu0 %v590
        %737 = vmatprep.mubr.f32.mxu0 %v207
        %738 = vmatmul.mubr.f32.gmra.mrb[0].mxu0 %v206
        %v739 = vpop.f32.mrb[0].mxu0
        %v740 = vadd.f32 %v663, %v739
        %v741 = vpop.f32.mrb[0].mxu0
        %v742 = vadd.f32 %v665, %v741
        %743 = vmatprep.mubr.f32.mxu0 %v211
        %744 = vmatmul.mubr.f32.gmra.mrb[0].mxu0 %v210
        %v745 = vpop.f32.mrb[0].mxu0
        %v746 = vadd.f32 %v669, %v745
        %v747 = vpop.f32.mrb[0].mxu0
        %v748 = vadd.f32 %v671, %v747
        %749 = vdwg.mxu0
        %750 = vmatprep.subr.mxu0 %v215
        %751 = vmatpush1.msra.mxu0 %v214
        %752 = vmatprep.subr.mxu0 %v221
        %753 = vmatpush1.msra.mxu0 %v220
        %754 = vmatprep.subr.mxu0 %v227
        %755 = vmatpush1.msra.mxu0 %v226
        %756 = vmatprep.subr.mxu0 %v233
        %757 = vmatpush1.msra.mxu0 %v232
        %758 = vmatprep.subr.mxu0 %v239
        %759 = vmatpush1.msra.mxu0 %v238
        %760 = vmatprep.subr.mxu0 %v245
        %761 = vmatpush1.msra.mxu0 %v244
        %762 = vmatprep.subr.mxu0 %v251
        %763 = vmatpush1.msra.mxu0 %v250
        %764 = vmatprep.subr.mxu0 %v257
        %765 = vmatpush1.msra.mxu0 %v256
        %766 = vmatprep.subr.mxu0 %v263
        %767 = vmatpush1.msra.mxu0 %v262
        %768 = vmatprep.subr.mxu0 %v269
        %769 = vmatpush1.msra.mxu0 %v268
        %770 = vmatprep.subr.mxu0 %v275
        %771 = vmatpush1.msra.mxu0 %v274
        %772 = vmatprep.subr.mxu0 %v281
        %773 = vmatpush1.msra.mxu0 %v280
        %774 = vmatprep.subr.mxu0 %v287
        %775 = vmatpush1.msra.mxu0 %v286
        %776 = vmatprep.subr.mxu0 %v293
        %777 = vmatpush1.msra.mxu0 %v292
        %778 = vmatprep.subr.mxu0 %v299
        %779 = vmatpush1.msra.mxu0 %v298
        %780 = vmatprep.subr.mxu0 %v305
        %781 = vmatpush1.msra.mxu0 %v304
        %782 = vmatprep.subr.mxu0 %v311
        %783 = vmatpush1.msra.mxu0 %v310
        %784 = vmatprep.subr.mxu0 %v317
        %785 = vmatpush1.msra.mxu0 %v316
        %786 = vmatprep.subr.mxu0 %v323
        %787 = vmatpush1.msra.mxu0 %v322
        %788 = vmatprep.subr.mxu0 %v329
        %789 = vmatpush1.msra.mxu0 %v328
        %790 = vmatprep.subr.mxu0 %v335
        %791 = vmatpush1.msra.mxu0 %v334
        %792 = vmatprep.subr.mxu0 %v341
        %793 = vmatpush1.msra.mxu0 %v340
        %794 = vmatprep.subr.mxu0 %v347
        %795 = vmatpush1.msra.mxu0 %v346
        %796 = vmatprep.subr.mxu0 %v353
        %797 = vmatpush1.msra.mxu0 %v352
        %798 = vmatprep.subr.mxu0 %v359
        %799 = vmatpush1.msra.mxu0 %v358
        %800 = vmatprep.subr.mxu0 %v365
        %801 = vmatpush1.msra.mxu0 %v364
        %802 = vmatprep.subr.mxu0 %v371
        %803 = vmatpush1.msra.mxu0 %v370
        %804 = vmatprep.subr.mxu0 %v377
        %805 = vmatpush1.msra.mxu0 %v376
        %806 = vmatprep.subr.mxu0 %v383
        %807 = vmatpush1.msra.mxu0 %v382
        %808 = vmatprep.subr.mxu0 %v389
        %809 = vmatpush1.msra.mxu0 %v388
        %810 = vmatprep.subr.mxu0 %v395
        %811 = vmatpush1.msra.mxu0 %v394
        %812 = vmatprep.subr.mxu0 %v401
        %813 = vmatpush1.msra.mxu0 %v400
        %814 = vmatprep.mubr.f32.mxu0 %v205
        %815 = vmatmul.mubr.f32.gmra.mrb[0].mxu0 %v204
        %v816 = vpop.f32.mrb[0].mxu0
        %v817 = vadd.f32 0.0, %v816
        %v818 = vpop.f32.mrb[0].mxu0
        %v819 = vadd.f32 0.0, %v818
        %820 = vmatprep.mubr.f32.mxu0 %v209
        %821 = vmatmul.mubr.f32.gmra.mrb[0].mxu0 %v208
        %v822 = vpop.f32.mrb[0].mxu0
        %v823 = vadd.f32 0.0, %v822
        %v824 = vpop.f32.mrb[0].mxu0
        %v825 = vadd.f32 0.0, %v824
        %826 = vdwg.mxu0
        %827 = vmatprep.subr.mxu0 %v407
        %828 = vmatpush1.msra.mxu0 %v406
        %829 = vmatprep.subr.mxu0 %v413
        %830 = vmatpush1.msra.mxu0 %v412
        %831 = vmatprep.subr.mxu0 %v419
        %832 = vmatpush1.msra.mxu0 %v418
        %833 = vmatprep.subr.mxu0 %v425
        %834 = vmatpush1.msra.mxu0 %v424
        %835 = vmatprep.subr.mxu0 %v431
        %836 = vmatpush1.msra.mxu0 %v430
        %837 = vmatprep.subr.mxu0 %v437
        %838 = vmatpush1.msra.mxu0 %v436
        %839 = vmatprep.subr.mxu0 %v443
        %840 = vmatpush1.msra.mxu0 %v442
        %841 = vmatprep.subr.mxu0 %v449
        %842 = vmatpush1.msra.mxu0 %v448
        %843 = vmatprep.subr.mxu0 %v455
        %844 = vmatpush1.msra.mxu0 %v454
        %845 = vmatprep.subr.mxu0 %v461
        %846 = vmatpush1.msra.mxu0 %v460
        %847 = vmatprep.subr.mxu0 %v467
        %848 = vmatpush1.msra.mxu0 %v466
        %849 = vmatprep.subr.mxu0 %v473
        %850 = vmatpush1.msra.mxu0 %v472
        %851 = vmatprep.subr.mxu0 %v479
        %852 = vmatpush1.msra.mxu0 %v478
        %853 = vmatprep.subr.mxu0 %v485
        %854 = vmatpush1.msra.mxu0 %v484
        %855 = vmatprep.subr.mxu0 %v491
        %856 = vmatpush1.msra.mxu0 %v490
        %857 = vmatprep.subr.mxu0 %v497
        %858 = vmatpush1.msra.mxu0 %v496
        %859 = vmatprep.subr.mxu0 %v503
        %860 = vmatpush1.msra.mxu0 %v502
        %861 = vmatprep.subr.mxu0 %v509
        %862 = vmatpush1.msra.mxu0 %v508
        %863 = vmatprep.subr.mxu0 %v515
        %864 = vmatpush1.msra.mxu0 %v514
        %865 = vmatprep.subr.mxu0 %v521
        %866 = vmatpush1.msra.mxu0 %v520
        %867 = vmatprep.subr.mxu0 %v527
        %868 = vmatpush1.msra.mxu0 %v526
        %869 = vmatprep.subr.mxu0 %v533
        %870 = vmatpush1.msra.mxu0 %v532
        %871 = vmatprep.subr.mxu0 %v539
        %872 = vmatpush1.msra.mxu0 %v538
        %873 = vmatprep.subr.mxu0 %v545
        %874 = vmatpush1.msra.mxu0 %v544
        %875 = vmatprep.subr.mxu0 %v551
        %876 = vmatpush1.msra.mxu0 %v550
        %877 = vmatprep.subr.mxu0 %v557
        %878 = vmatpush1.msra.mxu0 %v556
        %879 = vmatprep.subr.mxu0 %v563
        %880 = vmatpush1.msra.mxu0 %v562
        %881 = vmatprep.subr.mxu0 %v569
        %882 = vmatpush1.msra.mxu0 %v568
        %883 = vmatprep.subr.mxu0 %v575
        %884 = vmatpush1.msra.mxu0 %v574
        %885 = vmatprep.subr.mxu0 %v581
        %886 = vmatpush1.msra.mxu0 %v580
        %887 = vmatprep.subr.mxu0 %v587
        %888 = vmatpush1.msra.mxu0 %v586
        %889 = vmatprep.subr.mxu0 %v593
        %890 = vmatpush1.msra.mxu0 %v592
        %891 = vmatprep.mubr.f32.mxu0 %v207
        %892 = vmatmul.mubr.f32.gmra.mrb[0].mxu0 %v206
        %v893 = vpop.f32.mrb[0].mxu0
        %v894 = vadd.f32 %v817, %v893
        %v895 = vpop.f32.mrb[0].mxu0
        %v896 = vadd.f32 %v819, %v895
        %897 = vmatprep.mubr.f32.mxu0 %v211
        %898 = vmatmul.mubr.f32.gmra.mrb[0].mxu0 %v210
        %v899 = vpop.f32.mrb[0].mxu0
        %v900 = vadd.f32 %v823, %v899
        %v901 = vpop.f32.mrb[0].mxu0
        %v902 = vadd.f32 %v825, %v901
        %903 = vdwg.mxu0
        %904 = vmatprep.subr.mxu0 %v217
        %905 = vmatpush1.msra.mxu0 %v216
        %906 = vmatprep.subr.mxu0 %v223
        %907 = vmatpush1.msra.mxu0 %v222
        %908 = vmatprep.subr.mxu0 %v229
        %909 = vmatpush1.msra.mxu0 %v228
        %910 = vmatprep.subr.mxu0 %v235
        %911 = vmatpush1.msra.mxu0 %v234
        %912 = vmatprep.subr.mxu0 %v241
        %913 = vmatpush1.msra.mxu0 %v240
        %914 = vmatprep.subr.mxu0 %v247
        %915 = vmatpush1.msra.mxu0 %v246
        %916 = vmatprep.subr.mxu0 %v253
        %917 = vmatpush1.msra.mxu0 %v252
        %918 = vmatprep.subr.mxu0 %v259
        %919 = vmatpush1.msra.mxu0 %v258
        %920 = vmatprep.subr.mxu0 %v265
        %921 = vmatpush1.msra.mxu0 %v264
        %922 = vmatprep.subr.mxu0 %v271
        %923 = vmatpush1.msra.mxu0 %v270
        %924 = vmatprep.subr.mxu0 %v277
        %925 = vmatpush1.msra.mxu0 %v276
        %926 = vmatprep.subr.mxu0 %v283
        %927 = vmatpush1.msra.mxu0 %v282
        %928 = vmatprep.subr.mxu0 %v289
        %929 = vmatpush1.msra.mxu0 %v288
        %930 = vmatprep.subr.mxu0 %v295
        %931 = vmatpush1.msra.mxu0 %v294
        %932 = vmatprep.subr.mxu0 %v301
        %933 = vmatpush1.msra.mxu0 %v300
        %934 = vmatprep.subr.mxu0 %v307
        %935 = vmatpush1.msra.mxu0 %v306
        %936 = vmatprep.subr.mxu0 %v313
        %937 = vmatpush1.msra.mxu0 %v312
        %938 = vmatprep.subr.mxu0 %v319
        %939 = vmatpush1.msra.mxu0 %v318
        %940 = vmatprep.subr.mxu0 %v325
        %941 = vmatpush1.msra.mxu0 %v324
        %942 = vmatprep.subr.mxu0 %v331
        %943 = vmatpush1.msra.mxu0 %v330
        %944 = vmatprep.subr.mxu0 %v337
        %945 = vmatpush1.msra.mxu0 %v336
        %946 = vmatprep.subr.mxu0 %v343
        %947 = vmatpush1.msra.mxu0 %v342
        %948 = vmatprep.subr.mxu0 %v349
        %949 = vmatpush1.msra.mxu0 %v348
        %950 = vmatprep.subr.mxu0 %v355
        %951 = vmatpush1.msra.mxu0 %v354
        %952 = vmatprep.subr.mxu0 %v361
        %953 = vmatpush1.msra.mxu0 %v360
        %954 = vmatprep.subr.mxu0 %v367
        %955 = vmatpush1.msra.mxu0 %v366
        %956 = vmatprep.subr.mxu0 %v373
        %957 = vmatpush1.msra.mxu0 %v372
        %958 = vmatprep.subr.mxu0 %v379
        %959 = vmatpush1.msra.mxu0 %v378
        %960 = vmatprep.subr.mxu0 %v385
        %961 = vmatpush1.msra.mxu0 %v384
        %962 = vmatprep.subr.mxu0 %v391
        %963 = vmatpush1.msra.mxu0 %v390
        %964 = vmatprep.subr.mxu0 %v397
        %965 = vmatpush1.msra.mxu0 %v396
        %966 = vmatprep.subr.mxu0 %v403
        %967 = vmatpush1.msra.mxu0 %v402
        %968 = vmatprep.mubr.f32.mxu0 %v205
        %969 = vmatmul.mubr.f32.gmra.mrb[0].mxu0 %v204
        %v970 = vpop.f32.mrb[0].mxu0
        %v971 = vadd.f32 0.0, %v970
        %v972 = vpop.f32.mrb[0].mxu0
        %v973 = vadd.f32 0.0, %v972
        %974 = vmatprep.mubr.f32.mxu0 %v209
        %975 = vmatmul.mubr.f32.gmra.mrb[0].mxu0 %v208
        %v976 = vpop.f32.mrb[0].mxu0
        %v977 = vadd.f32 0.0, %v976
        %v978 = vpop.f32.mrb[0].mxu0
        %v979 = vadd.f32 0.0, %v978
        %980 = vdwg.mxu0
        %981 = vmatprep.subr.mxu0 %v409
        %982 = vmatpush1.msra.mxu0 %v408
        %983 = vmatprep.subr.mxu0 %v415
        %984 = vmatpush1.msra.mxu0 %v414
        %985 = vmatprep.subr.mxu0 %v421
        %986 = vmatpush1.msra.mxu0 %v420
        %987 = vmatprep.subr.mxu0 %v427
        %988 = vmatpush1.msra.mxu0 %v426
        %989 = vmatprep.subr.mxu0 %v433
        %990 = vmatpush1.msra.mxu0 %v432
        %991 = vmatprep.subr.mxu0 %v439
        %992 = vmatpush1.msra.mxu0 %v438
        %993 = vmatprep.subr.mxu0 %v445
        %994 = vmatpush1.msra.mxu0 %v444
        %995 = vmatprep.subr.mxu0 %v451
        %996 = vmatpush1.msra.mxu0 %v450
        %997 = vmatprep.subr.mxu0 %v457
        %998 = vmatpush1.msra.mxu0 %v456
        %999 = vmatprep.subr.mxu0 %v463
        %1000 = vmatpush1.msra.mxu0 %v462
        %1001 = vmatprep.subr.mxu0 %v469
        %1002 = vmatpush1.msra.mxu0 %v468
        %1003 = vmatprep.subr.mxu0 %v475
        %1004 = vmatpush1.msra.mxu0 %v474
        %1005 = vmatprep.subr.mxu0 %v481
        %1006 = vmatpush1.msra.mxu0 %v480
        %1007 = vmatprep.subr.mxu0 %v487
        %1008 = vmatpush1.msra.mxu0 %v486
        %1009 = vmatprep.subr.mxu0 %v493
        %1010 = vmatpush1.msra.mxu0 %v492
        %1011 = vmatprep.subr.mxu0 %v499
        %1012 = vmatpush1.msra.mxu0 %v498
        %1013 = vmatprep.subr.mxu0 %v505
        %1014 = vmatpush1.msra.mxu0 %v504
        %1015 = vmatprep.subr.mxu0 %v511
        %1016 = vmatpush1.msra.mxu0 %v510
        %1017 = vmatprep.subr.mxu0 %v517
        %1018 = vmatpush1.msra.mxu0 %v516
        %1019 = vmatprep.subr.mxu0 %v523
        %1020 = vmatpush1.msra.mxu0 %v522
        %1021 = vmatprep.subr.mxu0 %v529
        %1022 = vmatpush1.msra.mxu0 %v528
        %1023 = vmatprep.subr.mxu0 %v535
        %1024 = vmatpush1.msra.mxu0 %v534
        %1025 = vmatprep.subr.mxu0 %v541
        %1026 = vmatpush1.msra.mxu0 %v540
        %1027 = vmatprep.subr.mxu0 %v547
        %1028 = vmatpush1.msra.mxu0 %v546
        %1029 = vmatprep.subr.mxu0 %v553
        %1030 = vmatpush1.msra.mxu0 %v552
        %1031 = vmatprep.subr.mxu0 %v559
        %1032 = vmatpush1.msra.mxu0 %v558
        %1033 = vmatprep.subr.mxu0 %v565
        %1034 = vmatpush1.msra.mxu0 %v564
        %1035 = vmatprep.subr.mxu0 %v571
        %1036 = vmatpush1.msra.mxu0 %v570
        %1037 = vmatprep.subr.mxu0 %v577
        %1038 = vmatpush1.msra.mxu0 %v576
        %1039 = vmatprep.subr.mxu0 %v583
        %1040 = vmatpush1.msra.mxu0 %v582
        %1041 = vmatprep.subr.mxu0 %v589
        %1042 = vmatpush1.msra.mxu0 %v588
        %1043 = vmatprep.subr.mxu0 %v595
        %1044 = vmatpush1.msra.mxu0 %v594
        %1045 = vmatprep.mubr.f32.mxu0 %v207
        %1046 = vmatmul.mubr.f32.gmra.mrb[0].mxu0 %v206
        %v1047 = vpop.f32.mrb[0].mxu0
        %v1048 = vadd.f32 %v971, %v1047
        %v1049 = vpop.f32.mrb[0].mxu0
        %v1050 = vadd.f32 %v973, %v1049
        %1051 = vmatprep.mubr.f32.mxu0 %v211
        %1052 = vmatmul.mubr.f32.gmra.mrb[0].mxu0 %v210
        %v1053 = vpop.f32.mrb[0].mxu0
        %v1054 = vadd.f32 %v977, %v1053
        %v1055 = vpop.f32.mrb[0].mxu0
        %v1056 = vadd.f32 %v979, %v1055
        %1057 = vdwg.mxu0
        %1058 = vst [vmem:[%s199] sm:$0xff] %v740
        %1059 = vst [vmem:[%s199 + $0x8] sm:$0xff] %v742
        %1060 = vst [vmem:[%s199 + $0x10] sm:$0xff] %v894
        %1061 = vst [vmem:[%s199 + $0x18] sm:$0xff] %v896
        %1062 = vst [vmem:[%s199 + $0x20] sm:$0xff] %v1048
        %1063 = vst [vmem:[%s199 + $0x28] sm:$0xff] %v1050
        %1064 = vst [vmem:[%s199 + $0x30] sm:$0xff] %v746
        %1065 = vst [vmem:[%s199 + $0x38] sm:$0xff] %v748
        %1066 = vst [vmem:[%s199 + $0x40] sm:$0xff] %v900
        %1067 = vst [vmem:[%s199 + $0x48] sm:$0xff] %v902
        %1068 = vst [vmem:[%s199 + $0x50] sm:$0xff] %v1054
        %1069 = vst [vmem:[%s199 + $0x58] sm:$0xff] %v1056
        %s1070 = sand.u32 %s94, 1
        %s1071 = scalar_lea.sflag [#allocation4], %s1070
        %s1072 = sand.u32 %s94, 1
        %s1073 = smul.addr %s1072, 96
        %s1074 = scalar_lea.vmem [#allocation7], %s1073
        // Predicated region
        $region37: #{tpu_custom_call.1} parent=27 // pred_check
          %p1075 = pneg %p104
        $region38: #{tpu_custom_call.1} parent=27 // pred_check_branch
          %1077 = sbr.rel (%p1075) target = $region40
        $region39: #{tpu_custom_call.1} parent=27 // pred_region
          %s1078 = smul.u32 2, %s24
          %s1079 = smul.u32 6, %s25
          %s1081 = ssub.s32 1536, 1536
          %1082 = vsyncadd %s1071, %s1081
          %s1083 = smul.addr %s1078, 12
          %s1084 = sadd.s32 %s1079, %s1083
          %s1085 = smul.addr %s1084, 128
          %s1086 = scalar_lea.hbm %s2, %s1085
          %s1087 = sshll.u32 %s1074, 4
          %s1088 = int_to_ptr.vmem [resolvable:$true] %s1087
          %1093 = dma.vmem_to_hbm [thread:$0]  %s1088, 1536, %s1086, %s1071, 768, 1536, 48
        $region40: #{tpu_custom_call.1} parent=27 // pred_fallthru
          _
      $region28: #{tpu_custom_call.1} parent=5 // pred_fallthru
        _
      %p1094 = scmp.le.s32.totalorder 2, %s15
      // Predicated region
      $region41: #{tpu_custom_call.1} parent=5 // pred_check
        %p1095 = pneg %p1094
      $region42: #{tpu_custom_call.1} parent=5 // pred_check_branch
        %1097 = sbr.rel (%p1095) target = $region44
      $region43: #{tpu_custom_call.1} parent=5 // pred_region
        %s1098 = ssub.s32 %s15, 2
        // Predicated region
        $region45: #{tpu_custom_call.1} parent=43 // pred_check
          %p1099 = pneg %p110
        $region46: #{tpu_custom_call.1} parent=43 // pred_check_branch
          %1101 = sbr.rel (%p1099) target = $region48
        $region47: #{tpu_custom_call.1} parent=43 // pred_region
          %s1102 = sand.u32 %s95, 1
          %s1103 = scalar_lea.sflag [#allocation4], %s1102
          %s1104 = sand.u32 %s95, 1
          %s1105 = smul.addr %s1104, 96
          %s1106 = scalar_lea.vmem [#allocation7], %s1105
          %1107 = dma.done %s1103, 1536
        $region48: #{tpu_custom_call.1} parent=43 // pred_fallthru
          _
      $region44: #{tpu_custom_call.1} parent=5 // pred_fallthru
        _
    $region6: #{tpu_custom_call.1} parent=1 // loop_footer
      %s19 = sadd.s32 1, %s15
    $region7: #{tpu_custom_call.1} parent=1 // loop_footer_branch
      %14 = sbr.rel target = $region3
    $region8: #{tpu_custom_call.1} parent=1 // loop_exit
      _
    %1108 = vsyncpa [#allocation3], 1
    %s1109 = scalar_lea.sflag [#allocation3], 1
    %1110 = vsyncpa %s1109, 1
    %1111 = vsyncpa [#allocation6], 1
    %s1112 = scalar_lea.sflag [#allocation6], 1
    %1113 = vsyncpa %s1112, 1
    %1114 = vsyncpa [#allocation4], 1
    %s1115 = scalar_lea.sflag [#allocation4], 1
    %1116 = vsyncpa %s1115, 1

</llo_original>
